<compile_context>
chip_gen: v5e
topology: v5e:2x2
jax: 0.10.0
libtpu: 0.0.40
codegen_flags: <defaults>
</compile_context>

<pallas_src>
import functools

import jax
import jax.numpy as jnp
from jax.experimental import pallas as pl
from jax.experimental.pallas import tpu as pltpu

BN_EPS = 1e-5


def _conv_im2col_dot(region, w_ref, mask_ref, col_ref, *, w_img, pad, thw):
    """3x3 conv on one spatial tile as a single MXU dot.

    region:   (C_in, THW + 2*pad) matmul-dtype slab; lane r holds flattened
              spatial index (tile_start + r - pad) of the zero-halo'd image.
    w_ref:    (C_outP, 9*C_in) tap-major weights.
    mask_ref: (2, THW) column masks (row 0: x != 0, row 1: x != W-1).
    col_ref:  (9*C_in, THW) VMEM scratch -- the im2col tile.
    Returns the f32 (C_outP, THW) conv output of this tile.
    """
    c_in = region.shape[0]
    for t in range(9):  # static unroll over the 9 taps
        dy, dx = t // 3 - 1, t % 3 - 1
        s = pad + dy * w_img + dx                 # static lane shift in [0, 2*pad]
        tap = region[:, s:s + thw]                # (C_in, THW)
        if dx == -1:
            tap = tap * mask_ref[0:1, :]          # zero where x == 0
        elif dx == 1:
            tap = tap * mask_ref[1:2, :]          # zero where x == W-1
        col_ref[t * c_in:(t + 1) * c_in, :] = tap
    # (C_outP, 9*C_in) x (9*C_in, THW) -> (C_outP, THW), f32 accumulation on MXU.
    return jax.lax.dot_general(
        w_ref[...], col_ref[...],
        dimension_numbers=(((1,), (0,)), ((), ())),
        preferred_element_type=jnp.float32)


def _conv_stats_kernel(x_ref, w_ref, mask_ref, stats_ref, col_ref,
                       *, w_img, pad, thw):
    # Pass 1: conv tile -> per-channel sum / sum-of-squares, one merged store.
    acc = _conv_im2col_dot(x_ref[0, 0], w_ref, mask_ref, col_ref,
                           w_img=w_img, pad=pad, thw=thw)
    both = jnp.concatenate([acc, acc * acc], axis=0)           # (2*C_outP, THW)
    stats_ref[0, 0] = jnp.sum(both, axis=1, keepdims=True)     # (2*C_outP, 1)


def _conv_bn_relu_kernel(x_ref, w_ref, mask_ref, scale_ref, shift_ref,
                         out_ref, col_ref, *, w_img, pad, thw, c_out):
    # Pass 2: recompute the cheap conv, fuse folded BN + ReLU, lane-dense store.
    acc = _conv_im2col_dot(x_ref[0, 0], w_ref, mask_ref, col_ref,
                           w_img=w_img, pad=pad, thw=thw)
    y = acc[:c_out, :] * scale_ref[...] + shift_ref[...]
    out_ref[0] = jnp.maximum(y, 0.0).astype(out_ref.dtype)


def _choose_row_tile(h, w, step_bytes, budget):
    """Rows per spatial tile: th | h, (th*w) % 128 == 0, sized to a VMEM budget."""
    cands = [t for t in range(1, h) if h % t == 0 and (t * w) % 128 == 0]
    good = [t for t in cands if t * w <= 8192 and step_bytes(t) <= budget]
    if good:
        return max(good)
    fits = [t for t in cands if step_bytes(t) <= budget]
    if fits:
        return min(fits)
    return min(cands) if cands else h      # fallback: whole image per step


def single_conv_forward(x_nchw, conv_w, conv_b, bn_gamma, bn_beta,
                        *, matmul_dtype=jnp.bfloat16):
    """Conv2d(3x3, s=1, p=1, bias) + BatchNorm2d(training batch stats) + ReLU.

    x_nchw: (N, C_in, H, W); conv_w: (C_out, C_in, 3, 3); conv_b/gamma/beta: (C_out,).
    Returns NCHW in x_nchw's dtype. Use matmul_dtype=jnp.float32 for parity tests.
    """
    n, c_in, h, w = x_nchw.shape
    c_out = conv_w.shape[0]
    hw = h * w
    pad = w + 1                        # 1-row zero halo on the flattened H*W axis
    c_out_p = -(-c_out // 8) * 8       # pad C_out to a sublane multiple for the MXU

    # Conv bias is a per-channel constant; training-mode BN subtracts the batch
    # mean, which cancels it exactly in the returned activations -> skip it.
    del conv_b

    in_b = jnp.dtype(matmul_dtype).itemsize
    out_b = jnp.dtype(x_nchw.dtype).itemsize

    # Per-generation VMEM (v5e/v6e: 128 MiB, v7x: 64 MiB per TensorCore).
    try:
        vmem_cap = int(pltpu.get_tpu_info().vmem_capacity_bytes)
    except Exception:  # conservative default if the query is unavailable
        vmem_cap = 64 * 1024 * 1024

    def step_bytes(th):
        thw = th * w
        return (2 * c_in * (thw + 2 * pad) * in_b    # input tile (double-buffered)
                + 2 * c_out * thw * out_b            # output tile (double-buffered)
                + 9 * c_in * thw * in_b              # im2col VMEM scratch
                + c_out_p * thw * 4                  # f32 accumulator
                + c_out_p * 9 * c_in * in_b + 2 * thw * in_b)

    th = _choose_row_tile(h, w, step_bytes, budget=int(0.4 * vmem_cap))
    thw, ht = th * w, h // th
    reg = thw + 2 * pad
    vmem_limit = int(min(max(4 * step_bytes(th), 32 * 1024 * 1024),
                         int(0.85 * vmem_cap)))

    # Flattened NCHW (pure reshape) + zero halo, cast to the MXU input dtype,
    # gathered into per-tile windows with a 1-row overlap on each side.  XLA
    # fuses pad + cast + windowing into one pass over x (~(1 + 2/th)x input
    # bytes in bf16) -- no NHWC transpose, no im2col in HBM.
    # TODO(synk): for very large C_in*H*W replace the windowed copy with manual
    # halo-row DMA from HBM (memory_space=pl.ANY + pltpu.make_async_copy).
    x_flat = jnp.pad(x_nchw.reshape(n, c_in, hw),
                     ((0, 0), (0, 0), (pad, pad))).astype(matmul_dtype)
    x_tiles = jnp.stack(
        [x_flat[:, :, j * thw: j * thw + reg] for j in range(ht)],
        axis=1)                                             # (N, HT, C_in, REG)

    # (C_out, C_in, 3, 3) -> (C_outP, 9*C_in); column order = (ky, kx, C_in),
    # matching the im2col row order built in-kernel.
    w_mat = jnp.transpose(conv_w, (0, 2, 3, 1)).reshape(c_out, 9 * c_in)
    w_mat = jnp.pad(w_mat, ((0, c_out_p - c_out), (0, 0))).astype(matmul_dtype)

    # Column masks for the horizontally wrapped taps (dx = -1 / +1).
    col = jnp.arange(thw, dtype=jnp.int32) % w
    masks = jnp.stack([col != 0, col != w - 1]).astype(matmul_dtype)  # (2, THW)

    grid = (n, ht)
    cparams = pltpu.CompilerParams(
        dimension_semantics=("parallel", "parallel"),   # megacore-friendly on v7x
        vmem_limit_bytes=vmem_limit)

    # ---- pass 1: conv -> per-tile per-channel sum / sum-of-squares ----------
    stats = pl.pallas_call(
        functools.partial(_conv_stats_kernel, w_img=w, pad=pad, thw=thw),
        grid=grid,
        out_shape=jax.ShapeDtypeStruct((n, ht, 2 * c_out_p, 1), jnp.float32),
        in_specs=[
            pl.BlockSpec((1, 1, c_in, reg), lambda i, j: (i, j, 0, 0)),
            pl.BlockSpec((c_out_p, 9 * c_in), lambda i, j: (0, 0)),
            pl.BlockSpec((2, thw), lambda i, j: (0, 0)),
        ],
        out_specs=pl.BlockSpec((1, 1, 2 * c_out_p, 1), lambda i, j: (i, j, 0, 0)),
        scratch_shapes=[pltpu.VMEM((9 * c_in, thw), matmul_dtype)],
        compiler_params=cparams,
    )(x_tiles, w_mat, masks)

    # ---- batch statistics + BN fold (tiny (C_out,) math in plain JAX) -------
    s = jnp.sum(stats[..., 0], axis=(0, 1))                  # (2*C_outP,)
    p_total = float(n * hw)
    mean = s[:c_out] / p_total
    # NOTE: E[y^2] - E[y]^2 can lose precision when |mean| >> std; clamp >= 0.
    var = jnp.maximum(s[c_out_p:c_out_p + c_out] / p_total - mean * mean, 0.0)
    inv_std = jax.lax.rsqrt(var + BN_EPS)
    scale_v = bn_gamma.astype(jnp.float32) * inv_std
    shift_v = bn_beta.astype(jnp.float32) - mean * scale_v
    scale = scale_v.reshape(c_out, 1)
    shift = shift_v.reshape(c_out, 1)

    # ---- pass 2: recompute conv, fuse BN + ReLU, lane-dense NCHW-flat output -
    out_flat = pl.pallas_call(
        functools.partial(_conv_bn_relu_kernel, w_img=w, pad=pad, thw=thw,
                          c_out=c_out),
        grid=grid,
        out_shape=jax.ShapeDtypeStruct((n, c_out, hw), x_nchw.dtype),
        in_specs=[
            pl.BlockSpec((1, 1, c_in, reg), lambda i, j: (i, j, 0, 0)),
            pl.BlockSpec((c_out_p, 9 * c_in), lambda i, j: (0, 0)),
            pl.BlockSpec((2, thw), lambda i, j: (0, 0)),
            pl.BlockSpec((c_out, 1), lambda i, j: (0, 0)),
            pl.BlockSpec((c_out, 1), lambda i, j: (0, 0)),
        ],
        out_specs=pl.BlockSpec((1, c_out, thw), lambda i, j: (i, 0, j)),
        scratch_shapes=[pltpu.VMEM((9 * c_in, thw), matmul_dtype)],
        compiler_params=cparams,
    )(x_tiles, w_mat, masks, scale, shift)

    # (N, C_out, H*W) is already NCHW order -> free reshape, no transpose.
    return out_flat.reshape(n, c_out, h, w)


def _reference_forward(x, conv_w, conv_b, gamma, beta):
    """Pure-JAX f32 reference (elementwise conv, so no MXU precision ambiguity)."""
    n, c_in, h, w = x.shape
    c_out = conv_w.shape[0]
    xp = jnp.pad(x, ((0, 0), (0, 0), (1, 1), (1, 1)))
    y = jnp.zeros((n, c_out, h, w), jnp.float32) + conv_b.reshape(1, c_out, 1, 1)
    for ky in range(3):
        for kx in range(3):
            patch = xp[:, :, ky:ky + h, kx:kx + w]             # (N, C_in, H, W)
            wk = conv_w[:, :, ky, kx]                          # (C_out, C_in)
            y = y + jnp.sum(patch[:, None] * wk[None, :, :, None, None], axis=2)
    mean = y.mean(axis=(0, 2, 3), keepdims=True)
    var = y.var(axis=(0, 2, 3), keepdims=True)                 # biased, like PyTorch
    yn = (y - mean) * jax.lax.rsqrt(var + BN_EPS)
    yn = yn * gamma.reshape(1, c_out, 1, 1) + beta.reshape(1, c_out, 1, 1)
    return jnp.maximum(yn, 0.0)


if __name__ == "__main__":
    # Small shapes consistent with the module.
    N, C_IN, C_OUT, H, W = 2, 4, 4, 16, 16

    key = jax.random.PRNGKey(0)
    k_x, k_w, k_b = jax.random.split(key, 3)

    x = jax.random.normal(k_x, (N, C_IN, H, W), dtype=jnp.float32)
    fan_in = C_IN * 3 * 3
    conv_w = jax.random.normal(k_w, (C_OUT, C_IN, 3, 3), jnp.float32) / jnp.sqrt(fan_in)
    conv_b = jax.random.normal(k_b, (C_OUT,), jnp.float32) * 0.1
    bn_gamma = jnp.ones((C_OUT,), jnp.float32)    # BatchNorm2d default init
    bn_beta = jnp.zeros((C_OUT,), jnp.float32)

    out = jax.jit(single_conv_forward)(x, conv_w, conv_b, bn_gamma, bn_beta)
    jax.block_until_ready(out)
    assert out.shape == (N, C_OUT, H, W)

    # Loose check vs. a pure-JAX f32 reference (kernel matmuls run in bf16).
    ref = _reference_forward(x, conv_w, conv_b, bn_gamma, bn_beta)
    err = float(jnp.max(jnp.abs(out - ref)))
    assert err < 1e-1, f"max abs error {err}"

    print("KERNEL_OK")
</pallas_src>

<mosaic_0001>
module attributes {stable_mosaic.version = 11 : i64} {
  func.func @_conv_stats_kernel(%arg0: i32, %arg1: i32, %arg2: memref<1x1x4x162xbf16, #tpu.memory_space<vmem>>, %arg3: memref<8x36xbf16, #tpu.memory_space<vmem>>, %arg4: memref<2x128xbf16, #tpu.memory_space<vmem>>, %arg5: memref<1x1x16x1xf32, #tpu.memory_space<vmem>>, %arg6: memref<36x128xbf16, #tpu.memory_space<vmem>>) attributes {dimension_semantics = [#tpu.dimension_semantics<parallel>, #tpu.dimension_semantics<parallel>], iteration_bounds = array<i64: 2, 2>, scalar_prefetch = 0 : i64, scratch_operands = 1 : i64, tpu.core_type = #tpu.core_type<tc>, window_params = [{transform_indices = @transform_0, window_bounds = array<i64: 1, 1, 4, 162>}, {pipeline_mode = #tpu.pipeline_mode<synchronous>, transform_indices = @transform_1, window_bounds = array<i64: 8, 36>}, {pipeline_mode = #tpu.pipeline_mode<synchronous>, transform_indices = @transform_2, window_bounds = array<i64: 2, 128>}, {transform_indices = @transform_3, window_bounds = array<i64: 1, 1, 16, 1>}]} {
    %c0 = arith.constant 0 : index
    %c0_0 = arith.constant 0 : index
    %c0_1 = arith.constant 0 : index
    %c0_2 = arith.constant 0 : index
    %0 = vector.load %arg2[%c0, %c0_0, %c0_1, %c0_2] : memref<1x1x4x162xbf16, #tpu.memory_space<vmem>>, vector<1x1x4x162xbf16>
    %1 = vector.shape_cast %0 : vector<1x1x4x162xbf16> to vector<4x162xbf16>
    %2 = vector.extract_strided_slice %1 {offsets = [0, 0], sizes = [4, 128], strides = [1, 1]} : vector<4x162xbf16> to vector<4x128xbf16>
    %c0_3 = arith.constant 0 : index
    %c0_4 = arith.constant 0 : index
    %3 = vector.load %arg4[%c0_3, %c0_4] : memref<2x128xbf16, #tpu.memory_space<vmem>>, vector<1x128xbf16>
    %4 = vector.broadcast %3 : vector<1x128xbf16> to vector<4x128xbf16>
    %5 = arith.mulf %2, %4 : vector<4x128xbf16>
    %c0_5 = arith.constant 0 : index
    %c0_6 = arith.constant 0 : index
    %6 = vector.load %arg6[%c0_5, %c0_6] : memref<36x128xbf16, #tpu.memory_space<vmem>>, vector<4x128xbf16>
    tpu.vector_store %arg6[%c0_5, %c0_6], %5 {strides = array<i32>} : memref<36x128xbf16, #tpu.memory_space<vmem>>, vector<4x128xbf16>,
    %7 = vector.extract_strided_slice %1 {offsets = [0, 1], sizes = [4, 128], strides = [1, 1]} : vector<4x162xbf16> to vector<4x128xbf16>
    %c4 = arith.constant 4 : index
    %c0_7 = arith.constant 0 : index
    %8 = vector.load %arg6[%c4, %c0_7] : memref<36x128xbf16, #tpu.memory_space<vmem>>, vector<4x128xbf16>
    tpu.vector_store %arg6[%c4, %c0_7], %7 {strides = array<i32>} : memref<36x128xbf16, #tpu.memory_space<vmem>>, vector<4x128xbf16>,
    %9 = vector.extract_strided_slice %1 {offsets = [0, 2], sizes = [4, 128], strides = [1, 1]} : vector<4x162xbf16> to vector<4x128xbf16>
    %c1 = arith.constant 1 : index
    %c0_8 = arith.constant 0 : index
    %10 = vector.load %arg4[%c1, %c0_8] : memref<2x128xbf16, #tpu.memory_space<vmem>>, vector<1x128xbf16>
    %11 = vector.broadcast %10 : vector<1x128xbf16> to vector<4x128xbf16>
    %12 = arith.mulf %9, %11 : vector<4x128xbf16>
    %c8 = arith.constant 8 : index
    %c0_9 = arith.constant 0 : index
    %13 = vector.load %arg6[%c8, %c0_9] : memref<36x128xbf16, #tpu.memory_space<vmem>>, vector<4x128xbf16>
    tpu.vector_store %arg6[%c8, %c0_9], %12 {strides = array<i32>} : memref<36x128xbf16, #tpu.memory_space<vmem>>, vector<4x128xbf16>,
    %14 = vector.extract_strided_slice %1 {offsets = [0, 16], sizes = [4, 128], strides = [1, 1]} : vector<4x162xbf16> to vector<4x128xbf16>
    %c0_10 = arith.constant 0 : index
    %c0_11 = arith.constant 0 : index
    %15 = vector.load %arg4[%c0_10, %c0_11] : memref<2x128xbf16, #tpu.memory_space<vmem>>, vector<1x128xbf16>
    %16 = vector.broadcast %15 : vector<1x128xbf16> to vector<4x128xbf16>
    %17 = arith.mulf %14, %16 : vector<4x128xbf16>
    %c12 = arith.constant 12 : index
    %c0_12 = arith.constant 0 : index
    %18 = vector.load %arg6[%c12, %c0_12] : memref<36x128xbf16, #tpu.memory_space<vmem>>, vector<4x128xbf16>
    tpu.vector_store %arg6[%c12, %c0_12], %17 {strides = array<i32>} : memref<36x128xbf16, #tpu.memory_space<vmem>>, vector<4x128xbf16>,
    %19 = vector.extract_strided_slice %1 {offsets = [0, 17], sizes = [4, 128], strides = [1, 1]} : vector<4x162xbf16> to vector<4x128xbf16>
    %c16 = arith.constant 16 : index
    %c0_13 = arith.constant 0 : index
    %20 = vector.load %arg6[%c16, %c0_13] : memref<36x128xbf16, #tpu.memory_space<vmem>>, vector<4x128xbf16>
    tpu.vector_store %arg6[%c16, %c0_13], %19 {strides = array<i32>} : memref<36x128xbf16, #tpu.memory_space<vmem>>, vector<4x128xbf16>,
    %21 = vector.extract_strided_slice %1 {offsets = [0, 18], sizes = [4, 128], strides = [1, 1]} : vector<4x162xbf16> to vector<4x128xbf16>
    %c1_14 = arith.constant 1 : index
    %c0_15 = arith.constant 0 : index
    %22 = vector.load %arg4[%c1_14, %c0_15] : memref<2x128xbf16, #tpu.memory_space<vmem>>, vector<1x128xbf16>
    %23 = vector.broadcast %22 : vector<1x128xbf16> to vector<4x128xbf16>
    %24 = arith.mulf %21, %23 : vector<4x128xbf16>
    %c20 = arith.constant 20 : index
    %c0_16 = arith.constant 0 : index
    %25 = vector.load %arg6[%c20, %c0_16] : memref<36x128xbf16, #tpu.memory_space<vmem>>, vector<4x128xbf16>
    tpu.vector_store %arg6[%c20, %c0_16], %24 {strides = array<i32>} : memref<36x128xbf16, #tpu.memory_space<vmem>>, vector<4x128xbf16>,
    %26 = vector.extract_strided_slice %1 {offsets = [0, 32], sizes = [4, 128], strides = [1, 1]} : vector<4x162xbf16> to vector<4x128xbf16>
    %c0_17 = arith.constant 0 : index
    %c0_18 = arith.constant 0 : index
    %27 = vector.load %arg4[%c0_17, %c0_18] : memref<2x128xbf16, #tpu.memory_space<vmem>>, vector<1x128xbf16>
    %28 = vector.broadcast %27 : vector<1x128xbf16> to vector<4x128xbf16>
    %29 = arith.mulf %26, %28 : vector<4x128xbf16>
    %c24 = arith.constant 24 : index
    %c0_19 = arith.constant 0 : index
    %30 = vector.load %arg6[%c24, %c0_19] : memref<36x128xbf16, #tpu.memory_space<vmem>>, vector<4x128xbf16>
    tpu.vector_store %arg6[%c24, %c0_19], %29 {strides = array<i32>} : memref<36x128xbf16, #tpu.memory_space<vmem>>, vector<4x128xbf16>,
    %31 = vector.extract_strided_slice %1 {offsets = [0, 33], sizes = [4, 128], strides = [1, 1]} : vector<4x162xbf16> to vector<4x128xbf16>
    %c28 = arith.constant 28 : index
    %c0_20 = arith.constant 0 : index
    %32 = vector.load %arg6[%c28, %c0_20] : memref<36x128xbf16, #tpu.memory_space<vmem>>, vector<4x128xbf16>
    tpu.vector_store %arg6[%c28, %c0_20], %31 {strides = array<i32>} : memref<36x128xbf16, #tpu.memory_space<vmem>>, vector<4x128xbf16>,
    %33 = vector.extract_strided_slice %1 {offsets = [0, 34], sizes = [4, 128], strides = [1, 1]} : vector<4x162xbf16> to vector<4x128xbf16>
    %c1_21 = arith.constant 1 : index
    %c0_22 = arith.constant 0 : index
    %34 = vector.load %arg4[%c1_21, %c0_22] : memref<2x128xbf16, #tpu.memory_space<vmem>>, vector<1x128xbf16>
    %35 = vector.broadcast %34 : vector<1x128xbf16> to vector<4x128xbf16>
    %36 = arith.mulf %33, %35 : vector<4x128xbf16>
    %c32 = arith.constant 32 : index
    %c0_23 = arith.constant 0 : index
    %37 = vector.load %arg6[%c32, %c0_23] : memref<36x128xbf16, #tpu.memory_space<vmem>>, vector<4x128xbf16>
    tpu.vector_store %arg6[%c32, %c0_23], %36 {strides = array<i32>} : memref<36x128xbf16, #tpu.memory_space<vmem>>, vector<4x128xbf16>,
    %c0_24 = arith.constant 0 : index
    %c0_25 = arith.constant 0 : index
    %38 = vector.load %arg3[%c0_24, %c0_25] : memref<8x36xbf16, #tpu.memory_space<vmem>>, vector<8x36xbf16>
    %c0_26 = arith.constant 0 : index
    %c0_27 = arith.constant 0 : index
    %39 = vector.load %arg6[%c0_26, %c0_27] : memref<36x128xbf16, #tpu.memory_space<vmem>>, vector<36x128xbf16>
    %cst = arith.constant dense<0.000000e+00> : vector<8x128xf32>
    %40 = tpu.matmul %38, %39, %cst {dimension_numbers = #tpu.dot_dimension_numbers<[1], [0], [0], [1], [0, 0, 1, 1], [], []>} : vector<8x36xbf16>, vector<36x128xbf16>, vector<8x128xf32> -> vector<8x128xf32>
    %41 = arith.mulf %40, %40 : vector<8x128xf32>
    %42 = tpu.concatenate %40, %41 in 0 : vector<8x128xf32>, vector<8x128xf32> -> vector<16x128xf32>
    %cst_28 = arith.constant dense<0.000000e+00> : vector<16xf32>
    %43 = vector.multi_reduction <add>, %42, %cst_28 [1] : vector<16x128xf32> to vector<16xf32>
    %44 = vector.shape_cast %43 : vector<16xf32> to vector<16x1xf32>
    %c0_29 = arith.constant 0 : index
    %c0_30 = arith.constant 0 : index
    %c0_31 = arith.constant 0 : index
    %c0_32 = arith.constant 0 : index
    %45 = vector.load %arg5[%c0_29, %c0_30, %c0_31, %c0_32] : memref<1x1x16x1xf32, #tpu.memory_space<vmem>>, vector<1x1x16x1xf32>
    %46 = vector.shape_cast %45 : vector<1x1x16x1xf32> to vector<16x1xf32>
    %47 = vector.shape_cast %44 : vector<16x1xf32> to vector<1x1x16x1xf32>
    tpu.vector_store %arg5[%c0_29, %c0_30, %c0_31, %c0_32], %47 {strides = array<i32>} : memref<1x1x16x1xf32, #tpu.memory_space<vmem>>, vector<1x1x16x1xf32>,
    return
  }
  func.func @transform_0(%arg0: i32, %arg1: i32) -> (i32, i32, i32, i32) {
    %c0_i32 = arith.constant 0 : i32
    %c0_i32_0 = arith.constant 0 : i32
    %c0_i32_1 = arith.constant 0 : i32
    return %arg0, %arg1, %c0_i32, %c0_i32_0 : i32, i32, i32, i32
  }
  func.func @transform_1(%arg0: i32, %arg1: i32) -> (i32, i32) {
    %c0_i32 = arith.constant 0 : i32
    %c0_i32_0 = arith.constant 0 : i32
    %c0_i32_1 = arith.constant 0 : i32
    return %c0_i32, %c0_i32_0 : i32, i32
  }
  func.func @transform_2(%arg0: i32, %arg1: i32) -> (i32, i32) {
    %c0_i32 = arith.constant 0 : i32
    %c0_i32_0 = arith.constant 0 : i32
    %c0_i32_1 = arith.constant 0 : i32
    return %c0_i32, %c0_i32_0 : i32, i32
  }
  func.func @transform_3(%arg0: i32, %arg1: i32) -> (i32, i32, i32, i32) {
    %c0_i32 = arith.constant 0 : i32
    %c0_i32_0 = arith.constant 0 : i32
    %c0_i32_1 = arith.constant 0 : i32
    return %arg0, %arg1, %c0_i32, %c0_i32_0 : i32, i32, i32, i32
  }
}

module attributes {stable_mosaic.version = 11 : i64} {
  func.func @_conv_bn_relu_kernel(%arg0: i32, %arg1: i32, %arg2: memref<1x1x4x162xbf16, #tpu.memory_space<vmem>>, %arg3: memref<8x36xbf16, #tpu.memory_space<vmem>>, %arg4: memref<2x128xbf16, #tpu.memory_space<vmem>>, %arg5: memref<4x1xf32, #tpu.memory_space<vmem>>, %arg6: memref<4x1xf32, #tpu.memory_space<vmem>>, %arg7: memref<1x4x128xf32, #tpu.memory_space<vmem>>, %arg8: memref<36x128xbf16, #tpu.memory_space<vmem>>) attributes {dimension_semantics = [#tpu.dimension_semantics<parallel>, #tpu.dimension_semantics<parallel>], iteration_bounds = array<i64: 2, 2>, scalar_prefetch = 0 : i64, scratch_operands = 1 : i64, tpu.core_type = #tpu.core_type<tc>, window_params = [{transform_indices = @transform_0, window_bounds = array<i64: 1, 1, 4, 162>}, {pipeline_mode = #tpu.pipeline_mode<synchronous>, transform_indices = @transform_1, window_bounds = array<i64: 8, 36>}, {pipeline_mode = #tpu.pipeline_mode<synchronous>, transform_indices = @transform_2, window_bounds = array<i64: 2, 128>}, {pipeline_mode = #tpu.pipeline_mode<synchronous>, transform_indices = @transform_3, window_bounds = array<i64: 4, 1>}, {pipeline_mode = #tpu.pipeline_mode<synchronous>, transform_indices = @transform_4, window_bounds = array<i64: 4, 1>}, {transform_indices = @transform_5, window_bounds = array<i64: 1, 4, 128>}]} {
    %c0 = arith.constant 0 : index
    %c0_0 = arith.constant 0 : index
    %c0_1 = arith.constant 0 : index
    %c0_2 = arith.constant 0 : index
    %0 = vector.load %arg2[%c0, %c0_0, %c0_1, %c0_2] : memref<1x1x4x162xbf16, #tpu.memory_space<vmem>>, vector<1x1x4x162xbf16>
    %1 = vector.shape_cast %0 : vector<1x1x4x162xbf16> to vector<4x162xbf16>
    %2 = vector.extract_strided_slice %1 {offsets = [0, 0], sizes = [4, 128], strides = [1, 1]} : vector<4x162xbf16> to vector<4x128xbf16>
    %c0_3 = arith.constant 0 : index
    %c0_4 = arith.constant 0 : index
    %3 = vector.load %arg4[%c0_3, %c0_4] : memref<2x128xbf16, #tpu.memory_space<vmem>>, vector<1x128xbf16>
    %4 = vector.broadcast %3 : vector<1x128xbf16> to vector<4x128xbf16>
    %5 = arith.mulf %2, %4 : vector<4x128xbf16>
    %c0_5 = arith.constant 0 : index
    %c0_6 = arith.constant 0 : index
    %6 = vector.load %arg8[%c0_5, %c0_6] : memref<36x128xbf16, #tpu.memory_space<vmem>>, vector<4x128xbf16>
    tpu.vector_store %arg8[%c0_5, %c0_6], %5 {strides = array<i32>} : memref<36x128xbf16, #tpu.memory_space<vmem>>, vector<4x128xbf16>,
    %7 = vector.extract_strided_slice %1 {offsets = [0, 1], sizes = [4, 128], strides = [1, 1]} : vector<4x162xbf16> to vector<4x128xbf16>
    %c4 = arith.constant 4 : index
    %c0_7 = arith.constant 0 : index
    %8 = vector.load %arg8[%c4, %c0_7] : memref<36x128xbf16, #tpu.memory_space<vmem>>, vector<4x128xbf16>
    tpu.vector_store %arg8[%c4, %c0_7], %7 {strides = array<i32>} : memref<36x128xbf16, #tpu.memory_space<vmem>>, vector<4x128xbf16>,
    %9 = vector.extract_strided_slice %1 {offsets = [0, 2], sizes = [4, 128], strides = [1, 1]} : vector<4x162xbf16> to vector<4x128xbf16>
    %c1 = arith.constant 1 : index
    %c0_8 = arith.constant 0 : index
    %10 = vector.load %arg4[%c1, %c0_8] : memref<2x128xbf16, #tpu.memory_space<vmem>>, vector<1x128xbf16>
    %11 = vector.broadcast %10 : vector<1x128xbf16> to vector<4x128xbf16>
    %12 = arith.mulf %9, %11 : vector<4x128xbf16>
    %c8 = arith.constant 8 : index
    %c0_9 = arith.constant 0 : index
    %13 = vector.load %arg8[%c8, %c0_9] : memref<36x128xbf16, #tpu.memory_space<vmem>>, vector<4x128xbf16>
    tpu.vector_store %arg8[%c8, %c0_9], %12 {strides = array<i32>} : memref<36x128xbf16, #tpu.memory_space<vmem>>, vector<4x128xbf16>,
    %14 = vector.extract_strided_slice %1 {offsets = [0, 16], sizes = [4, 128], strides = [1, 1]} : vector<4x162xbf16> to vector<4x128xbf16>
    %c0_10 = arith.constant 0 : index
    %c0_11 = arith.constant 0 : index
    %15 = vector.load %arg4[%c0_10, %c0_11] : memref<2x128xbf16, #tpu.memory_space<vmem>>, vector<1x128xbf16>
    %16 = vector.broadcast %15 : vector<1x128xbf16> to vector<4x128xbf16>
    %17 = arith.mulf %14, %16 : vector<4x128xbf16>
    %c12 = arith.constant 12 : index
    %c0_12 = arith.constant 0 : index
    %18 = vector.load %arg8[%c12, %c0_12] : memref<36x128xbf16, #tpu.memory_space<vmem>>, vector<4x128xbf16>
    tpu.vector_store %arg8[%c12, %c0_12], %17 {strides = array<i32>} : memref<36x128xbf16, #tpu.memory_space<vmem>>, vector<4x128xbf16>,
    %19 = vector.extract_strided_slice %1 {offsets = [0, 17], sizes = [4, 128], strides = [1, 1]} : vector<4x162xbf16> to vector<4x128xbf16>
    %c16 = arith.constant 16 : index
    %c0_13 = arith.constant 0 : index
    %20 = vector.load %arg8[%c16, %c0_13] : memref<36x128xbf16, #tpu.memory_space<vmem>>, vector<4x128xbf16>
    tpu.vector_store %arg8[%c16, %c0_13], %19 {strides = array<i32>} : memref<36x128xbf16, #tpu.memory_space<vmem>>, vector<4x128xbf16>,
    %21 = vector.extract_strided_slice %1 {offsets = [0, 18], sizes = [4, 128], strides = [1, 1]} : vector<4x162xbf16> to vector<4x128xbf16>
    %c1_14 = arith.constant 1 : index
    %c0_15 = arith.constant 0 : index
    %22 = vector.load %arg4[%c1_14, %c0_15] : memref<2x128xbf16, #tpu.memory_space<vmem>>, vector<1x128xbf16>
    %23 = vector.broadcast %22 : vector<1x128xbf16> to vector<4x128xbf16>
    %24 = arith.mulf %21, %23 : vector<4x128xbf16>
    %c20 = arith.constant 20 : index
    %c0_16 = arith.constant 0 : index
    %25 = vector.load %arg8[%c20, %c0_16] : memref<36x128xbf16, #tpu.memory_space<vmem>>, vector<4x128xbf16>
    tpu.vector_store %arg8[%c20, %c0_16], %24 {strides = array<i32>} : memref<36x128xbf16, #tpu.memory_space<vmem>>, vector<4x128xbf16>,
    %26 = vector.extract_strided_slice %1 {offsets = [0, 32], sizes = [4, 128], strides = [1, 1]} : vector<4x162xbf16> to vector<4x128xbf16>
    %c0_17 = arith.constant 0 : index
    %c0_18 = arith.constant 0 : index
    %27 = vector.load %arg4[%c0_17, %c0_18] : memref<2x128xbf16, #tpu.memory_space<vmem>>, vector<1x128xbf16>
    %28 = vector.broadcast %27 : vector<1x128xbf16> to vector<4x128xbf16>
    %29 = arith.mulf %26, %28 : vector<4x128xbf16>
    %c24 = arith.constant 24 : index
    %c0_19 = arith.constant 0 : index
    %30 = vector.load %arg8[%c24, %c0_19] : memref<36x128xbf16, #tpu.memory_space<vmem>>, vector<4x128xbf16>
    tpu.vector_store %arg8[%c24, %c0_19], %29 {strides = array<i32>} : memref<36x128xbf16, #tpu.memory_space<vmem>>, vector<4x128xbf16>,
    %31 = vector.extract_strided_slice %1 {offsets = [0, 33], sizes = [4, 128], strides = [1, 1]} : vector<4x162xbf16> to vector<4x128xbf16>
    %c28 = arith.constant 28 : index
    %c0_20 = arith.constant 0 : index
    %32 = vector.load %arg8[%c28, %c0_20] : memref<36x128xbf16, #tpu.memory_space<vmem>>, vector<4x128xbf16>
    tpu.vector_store %arg8[%c28, %c0_20], %31 {strides = array<i32>} : memref<36x128xbf16, #tpu.memory_space<vmem>>, vector<4x128xbf16>,
    %33 = vector.extract_strided_slice %1 {offsets = [0, 34], sizes = [4, 128], strides = [1, 1]} : vector<4x162xbf16> to vector<4x128xbf16>
    %c1_21 = arith.constant 1 : index
    %c0_22 = arith.constant 0 : index
    %34 = vector.load %arg4[%c1_21, %c0_22] : memref<2x128xbf16, #tpu.memory_space<vmem>>, vector<1x128xbf16>
    %35 = vector.broadcast %34 : vector<1x128xbf16> to vector<4x128xbf16>
    %36 = arith.mulf %33, %35 : vector<4x128xbf16>
    %c32 = arith.constant 32 : index
    %c0_23 = arith.constant 0 : index
    %37 = vector.load %arg8[%c32, %c0_23] : memref<36x128xbf16, #tpu.memory_space<vmem>>, vector<4x128xbf16>
    tpu.vector_store %arg8[%c32, %c0_23], %36 {strides = array<i32>} : memref<36x128xbf16, #tpu.memory_space<vmem>>, vector<4x128xbf16>,
    %c0_24 = arith.constant 0 : index
    %c0_25 = arith.constant 0 : index
    %38 = vector.load %arg3[%c0_24, %c0_25] : memref<8x36xbf16, #tpu.memory_space<vmem>>, vector<8x36xbf16>
    %c0_26 = arith.constant 0 : index
    %c0_27 = arith.constant 0 : index
    %39 = vector.load %arg8[%c0_26, %c0_27] : memref<36x128xbf16, #tpu.memory_space<vmem>>, vector<36x128xbf16>
    %cst = arith.constant dense<0.000000e+00> : vector<8x128xf32>
    %40 = tpu.matmul %38, %39, %cst {dimension_numbers = #tpu.dot_dimension_numbers<[1], [0], [0], [1], [0, 0, 1, 1], [], []>} : vector<8x36xbf16>, vector<36x128xbf16>, vector<8x128xf32> -> vector<8x128xf32>
    %41 = vector.extract_strided_slice %40 {offsets = [0, 0], sizes = [4, 128], strides = [1, 1]} : vector<8x128xf32> to vector<4x128xf32>
    %c0_28 = arith.constant 0 : index
    %c0_29 = arith.constant 0 : index
    %42 = vector.load %arg5[%c0_28, %c0_29] : memref<4x1xf32, #tpu.memory_space<vmem>>, vector<4x1xf32>
    %43 = vector.broadcast %42 : vector<4x1xf32> to vector<4x128xf32>
    %44 = arith.mulf %41, %43 : vector<4x128xf32>
    %c0_30 = arith.constant 0 : index
    %c0_31 = arith.constant 0 : index
    %45 = vector.load %arg6[%c0_30, %c0_31] : memref<4x1xf32, #tpu.memory_space<vmem>>, vector<4x1xf32>
    %46 = vector.broadcast %45 : vector<4x1xf32> to vector<4x128xf32>
    %47 = arith.addf %44, %46 : vector<4x128xf32>
    %cst_32 = arith.constant 0.000000e+00 : f32
    %48 = vector.broadcast %cst_32 : f32 to vector<4x128xf32>
    %49 = arith.maximumf %47, %48 : vector<4x128xf32>
    %c0_33 = arith.constant 0 : index
    %c0_34 = arith.constant 0 : index
    %c0_35 = arith.constant 0 : index
    %50 = vector.load %arg7[%c0_33, %c0_34, %c0_35] : memref<1x4x128xf32, #tpu.memory_space<vmem>>, vector<1x4x128xf32>
    %51 = vector.shape_cast %50 : vector<1x4x128xf32> to vector<4x128xf32>
    %52 = vector.shape_cast %49 : vector<4x128xf32> to vector<1x4x128xf32>
    tpu.vector_store %arg7[%c0_33, %c0_34, %c0_35], %52 {strides = array<i32>} : memref<1x4x128xf32, #tpu.memory_space<vmem>>, vector<1x4x128xf32>,
    return
  }
  func.func @transform_0(%arg0: i32, %arg1: i32) -> (i32, i32, i32, i32) {
    %c0_i32 = arith.constant 0 : i32
    %c0_i32_0 = arith.constant 0 : i32
    %c0_i32_1 = arith.constant 0 : i32
    return %arg0, %arg1, %c0_i32, %c0_i32_0 : i32, i32, i32, i32
  }
  func.func @transform_1(%arg0: i32, %arg1: i32) -> (i32, i32) {
    %c0_i32 = arith.constant 0 : i32
    %c0_i32_0 = arith.constant 0 : i32
    %c0_i32_1 = arith.constant 0 : i32
    return %c0_i32, %c0_i32_0 : i32, i32
  }
  func.func @transform_2(%arg0: i32, %arg1: i32) -> (i32, i32) {
    %c0_i32 = arith.constant 0 : i32
    %c0_i32_0 = arith.constant 0 : i32
    %c0_i32_1 = arith.constant 0 : i32
    return %c0_i32, %c0_i32_0 : i32, i32
  }
  func.func @transform_3(%arg0: i32, %arg1: i32) -> (i32, i32) {
    %c0_i32 = arith.constant 0 : i32
    %c0_i32_0 = arith.constant 0 : i32
    %c0_i32_1 = arith.constant 0 : i32
    return %c0_i32, %c0_i32_0 : i32, i32
  }
  func.func @transform_4(%arg0: i32, %arg1: i32) -> (i32, i32) {
    %c0_i32 = arith.constant 0 : i32
    %c0_i32_0 = arith.constant 0 : i32
    %c0_i32_1 = arith.constant 0 : i32
    return %c0_i32, %c0_i32_0 : i32, i32
  }
  func.func @transform_5(%arg0: i32, %arg1: i32) -> (i32, i32, i32) {
    %c0_i32 = arith.constant 0 : i32
    %c0_i32_0 = arith.constant 0 : i32
    return %arg0, %c0_i32, %arg1 : i32, i32, i32
  }
}

</mosaic_0001>

<llo_original>
// kernel: single_conv_forward.2
$region0: #{single_conv_forward.2}
  #allocation0 [shape = 'u32[]', space=smem, size = 0x4, offset = 0x4, fixed_abs, tag = 'smem constant byte address 0x4 - core index']
  #allocation1 [shape = 'u32[72,128]{1,0:T(1,128)}', space=vmem, size = 0x9000, scoped, tag = 'internal scratch']
  #allocation2 [shape = 'bf16[36,128]{1,0:T(8,128)(2,1)}', space=vmem, size = 0x2800, scoped, tag = 'scratch operand']
  %s0 = inlined_call_operand.vmem [shape: bf16[2,2,4,162], index: 0, kind: input, shape index: {}]
  %s1 = inlined_call_operand.vmem [shape: bf16[8,36], index: 1, kind: input, shape index: {}]
  %s2 = inlined_call_operand.vmem [shape: bf16[2,128], index: 2, kind: input, shape index: {}]
  %s3 = inlined_call_operand.vmem [shape: f32[2,2,16,1], index: 3, kind: output, shape index: {}]
  %s4 = sld [smem:[#allocation0]]
  $region45: #{single_conv_forward.2} parent=0
    _
  %s6 = ssub.s32 1, %s4
  %s7 = scalar_select 0, %s6, %s4
  loop: start=0, step=1, limit=6
  $region2: #{single_conv_forward.2} parent=0 // loop_pre_header
    _
  $region3: #{single_conv_forward.2} parent=0 // loop_header
    %s9 = sphi 0, %s13
    %p10 = scmp.ge.s32.totalorder %s9, 6
    %s16 = sphi 0, %s28
    %s17 = sphi 0, %s24
    %s18 = sphi 0, %s16
    %s19 = sphi 0, %s17
    %s20 = sphi 0, %s18
    %s21 = sphi 0, %s19
    %s33 = sphi 0, %s35
    %s36 = sphi 0, %s33
    %s37 = sphi 0, %s36
    %s53 = sphi 0, %s37
    %s57 = sphi 0, %s57
    %s59 = sphi 0, %s57
    %s60 = sphi 0, %s59
    %s74 = sphi 0, %s60
    %s78 = sphi 0, %s78
    %s80 = sphi 0, %s78
    %s81 = sphi 0, %s80
    %s95 = sphi 0, %s81
    %s103 = sphi 0, %s105
    %s106 = sphi 0, %s103
    %s107 = sphi 0, %s106
    %s123 = sphi 0, %s107
  $region4: #{single_conv_forward.2} parent=0 // loop_header_branch
    %12 = sbr.rel (%p10) target = $region8
  $region5: #{single_conv_forward.2} parent=0 // loop_body
    %s14 = ssub.s32 %s9, 1
    %s15 = ssub.s32 %s9, 2
    %s22 = sadd.s32 1, %s17
    %p23 = scmp.ge.s32.totalorder %s22, 2
    %s24 = scalar_select %p23, 0, %s22
    %s25 = sadd.s32 1, %s16
    %s26 = scalar_select %p23, %s25, %s16
    %p27 = scmp.ge.s32.totalorder %s26, 2
    %s28 = scalar_select %p27, 0, %s26
    %s29 = ssub.s32 %s16, %s28
    %s30 = ssub.s32 %s17, %s24
    %s31 = sor.u32 %s29, %s30
    %p32 = scmp.eq.s32.totalorder %s31, 0
    %s34 = sadd.s32 %s33, 1
    %s35 = scalar_select %p32, %s33, %s34
    %p38 = pneg %p32
    %p39 = scmp.eq.s32.totalorder %s9, 3
    %p40 = por %p38, %p39
    %p41 = scmp.ne.s32.totalorder %s33, %s36
    %p42 = scmp.eq.s32.totalorder %s9, 0
    %p43 = por %p41, %p42
    %p44 = scmp.ne.s32.totalorder %s33, %s36
    %p45 = scmp.eq.s32.totalorder %s14, 3
    %p46 = por %p44, %p45
    %p47 = scmp.ne.s32.totalorder %s36, %s37
    %p48 = scmp.eq.s32.totalorder %s14, 0
    %p49 = por %p47, %p48
    %p50 = scmp.ne.s32.totalorder %s36, %s37
    %p51 = scmp.eq.s32.totalorder %s15, 3
    %p52 = por %p50, %p51
    %p54 = scmp.ne.s32.totalorder %s37, %s53
    %p55 = scmp.eq.s32.totalorder %s15, 0
    %p56 = por %p54, %p55
    %s58 = sadd.s32 %s57, 1
    %p61 = scmp.eq.s32.totalorder %s9, 3
    %p62 = scmp.ne.s32.totalorder %s57, %s59
    %p63 = scmp.eq.s32.totalorder %s9, 0
    %p64 = por %p62, %p63
    %p65 = scmp.ne.s32.totalorder %s57, %s59
    %p66 = scmp.eq.s32.totalorder %s14, 3
    %p67 = por %p65, %p66
    %p68 = scmp.ne.s32.totalorder %s59, %s60
    %p69 = scmp.eq.s32.totalorder %s14, 0
    %p70 = por %p68, %p69
    %p71 = scmp.ne.s32.totalorder %s59, %s60
    %p72 = scmp.eq.s32.totalorder %s15, 3
    %p73 = por %p71, %p72
    %p75 = scmp.ne.s32.totalorder %s60, %s74
    %p76 = scmp.eq.s32.totalorder %s15, 0
    %p77 = por %p75, %p76
    %s79 = sadd.s32 %s78, 1
    %p82 = scmp.eq.s32.totalorder %s9, 3
    %p83 = scmp.ne.s32.totalorder %s78, %s80
    %p84 = scmp.eq.s32.totalorder %s9, 0
    %p85 = por %p83, %p84
    %p86 = scmp.ne.s32.totalorder %s78, %s80
    %p87 = scmp.eq.s32.totalorder %s14, 3
    %p88 = por %p86, %p87
    %p89 = scmp.ne.s32.totalorder %s80, %s81
    %p90 = scmp.eq.s32.totalorder %s14, 0
    %p91 = por %p89, %p90
    %p92 = scmp.ne.s32.totalorder %s80, %s81
    %p93 = scmp.eq.s32.totalorder %s15, 3
    %p94 = por %p92, %p93
    %p96 = scmp.ne.s32.totalorder %s81, %s95
    %p97 = scmp.eq.s32.totalorder %s15, 0
    %p98 = por %p96, %p97
    %s99 = ssub.s32 %s16, %s28
    %s100 = ssub.s32 %s17, %s24
    %s101 = sor.u32 %s99, %s100
    %p102 = scmp.eq.s32.totalorder %s101, 0
    %s104 = sadd.s32 %s103, 1
    %s105 = scalar_select %p102, %s103, %s104
    %p108 = pneg %p102
    %p109 = scmp.eq.s32.totalorder %s9, 3
    %p110 = por %p108, %p109
    %p111 = scmp.ne.s32.totalorder %s103, %s106
    %p112 = scmp.eq.s32.totalorder %s9, 0
    %p113 = por %p111, %p112
    %p114 = scmp.ne.s32.totalorder %s103, %s106
    %p115 = scmp.eq.s32.totalorder %s14, 3
    %p116 = por %p114, %p115
    %p117 = scmp.ne.s32.totalorder %s106, %s107
    %p118 = scmp.eq.s32.totalorder %s14, 0
    %p119 = por %p117, %p118
    %p120 = scmp.ne.s32.totalorder %s106, %s107
    %p121 = scmp.eq.s32.totalorder %s15, 3
    %p122 = por %p120, %p121
    %p124 = scmp.ne.s32.totalorder %s107, %s123
    %p125 = scmp.eq.s32.totalorder %s15, 0
    %p126 = por %p124, %p125
    %p127 = scmp.le.s32.totalorder 1, %s9
    %p128 = scmp.lt.s32.totalorder %s9, 5
    %p129 = pnand %p127, %p128
    %p130 = pneg %p129
    // Predicated region
    $region9: #{single_conv_forward.2} parent=5 // pred_check
      _
    $region10: #{single_conv_forward.2} parent=5 // pred_check_branch
      %132 = sbr.rel (%p129) target = $region12
    $region11: #{single_conv_forward.2} parent=5 // pred_region
      %s133 = ssub.s32 %s9, 1
      // Predicated region
      $region13: #{single_conv_forward.2} parent=11 // pred_check
        %p134 = pneg %p70
      $region14: #{single_conv_forward.2} parent=11 // pred_check_branch
        %136 = sbr.rel (%p134) target = $region16
      $region15: #{single_conv_forward.2} parent=11 // pred_region
        _
      $region16: #{single_conv_forward.2} parent=11 // pred_fallthru
        _
      // Predicated region
      $region17: #{single_conv_forward.2} parent=11 // pred_check
        %p137 = pneg %p91
      $region18: #{single_conv_forward.2} parent=11 // pred_check_branch
        %139 = sbr.rel (%p137) target = $region20
      $region19: #{single_conv_forward.2} parent=11 // pred_region
        _
      $region20: #{single_conv_forward.2} parent=11 // pred_fallthru
        _
    $region12: #{single_conv_forward.2} parent=5 // pred_fallthru
      _
    %p140 = scmp.lt.s32.totalorder %s9, 4
    // Predicated region
    $region21: #{single_conv_forward.2} parent=5 // pred_check
      %p141 = pneg %p140
    $region22: #{single_conv_forward.2} parent=5 // pred_check_branch
      %143 = sbr.rel (%p141) target = $region24
    $region23: #{single_conv_forward.2} parent=5 // pred_region
      // Predicated region
      $region25: #{single_conv_forward.2} parent=23 // pred_check
        %p144 = pneg %p43
      $region26: #{single_conv_forward.2} parent=23 // pred_check_branch
        %146 = sbr.rel (%p144) target = $region28
      $region27: #{single_conv_forward.2} parent=23 // pred_region
        %p147 = scmp.lt.s32.totalorder %s16, 1
        %s148 = scalar_select %p147, %s16, 1
        %p149 = scmp.lt.s32.totalorder %s17, 1
        %s150 = scalar_select %p149, %s17, 1
        %s151 = smul.addr %s150, 2
        %s152 = smul.addr %s148, 4
        %s153 = sadd.s32 %s151, %s152
        %s154 = smul.addr %s153, 2
        %s155 = scalar_lea.vmem %s0, %s154
      $region28: #{single_conv_forward.2} parent=23 // pred_fallthru
        _
    $region24: #{single_conv_forward.2} parent=5 // pred_fallthru
      _
    %p156 = scmp.le.s32.totalorder 1, %s9
    %p157 = scmp.lt.s32.totalorder %s9, 5
    %p158 = pnand %p156, %p157
    %p159 = pneg %p158
    // Predicated region
    $region29: #{single_conv_forward.2} parent=5 // pred_check
      _
    $region30: #{single_conv_forward.2} parent=5 // pred_check_branch
      %161 = sbr.rel (%p158) target = $region32
    $region31: #{single_conv_forward.2} parent=5 // pred_region
      %s162 = ssub.s32 %s9, 1
      %p163 = scmp.lt.s32.totalorder %s18, 1
      %s164 = scalar_select %p163, %s18, 1
      %p165 = scmp.lt.s32.totalorder %s19, 1
      %s166 = scalar_select %p165, %s19, 1
      %s167 = smul.addr %s166, 2
      %s168 = smul.addr %s164, 4
      %s169 = sadd.s32 %s167, %s168
      %s170 = smul.addr %s169, 2
      %s171 = scalar_lea.vmem %s0, %s170
      %p172 = pneg %p49
      %p173 = pneg %p46
      %p174 = pneg %p70
      %p175 = pneg %p67
      %p176 = pneg %p91
      %p177 = pneg %p88
      %p178 = pneg %p119
      %p179 = pneg %p116
      %p180 = scmp.lt.s32.totalorder %s18, 1
      %s181 = scalar_select %p180, %s18, 1
      %p182 = scmp.lt.s32.totalorder %s19, 1
      %s183 = scalar_select %p182, %s19, 1
      %s184 = smul.addr %s183, 2
      %s185 = smul.addr %s181, 4
      %s186 = sadd.s32 %s184, %s185
      %s187 = smul.addr %s186, 8
      %s188 = scalar_lea.vmem %s3, %s187
      %p189 = scmp.lt.s32.totalorder %s18, 1
      %s190 = scalar_select %p189, %s18, 1
      %p191 = scmp.lt.s32.totalorder %s19, 1
      %s192 = scalar_select %p191, %s19, 1
      %s193 = smul.addr %s192, 2
      %s194 = smul.addr %s190, 4
      %s195 = sadd.s32 %s193, %s194
      %s196 = smul.addr %s195, 2
      %s197 = scalar_lea.vmem %s0, %s196
      %p198 = scmp.lt.s32.totalorder %s18, 1
      %s199 = scalar_select %p198, %s18, 1
      %p200 = scmp.lt.s32.totalorder %s19, 1
      %s201 = scalar_select %p200, %s19, 1
      %s202 = smul.addr %s201, 2
      %s203 = smul.addr %s199, 4
      %s204 = sadd.s32 %s202, %s203
      %s205 = smul.addr %s204, 8
      %s206 = scalar_lea.vmem %s3, %s205
      %v208 = vld [vmem:[%s197] sm:$0xf]
      %v209 = vld [vmem:[%s2] sm:$0x1]
      %v211 = vpack.i.b16 %v209, %v209
      %v213 = vperm.slane %v211, 0
      %v214 = vunpack.c.l.bf16 %v208
      %v215 = vunpack.c.l.bf16 %v213
      %v216 = vmul.f32 %v214, %v215
      %v217 = vpack.c.bf16 %v216, %v216
      %218 = vst [vmem:[#allocation2] sm:$0x3] %v217
      %s220 = scalar_lea.vmem [#allocation1], 1
      %221 = vst [vmem:[%s220] ss:$2 sm:$0xff] %v208
      %v222 = vld.sshfl [vmem:[#allocation1] sm:$0xff pattern:$0x75643120]
      %224 = vrot.lane.b32.xlu0 %v222, 127
      %v225 = vpop.permute.xlu0 %224
      %v226 = vrot.slane %v225, 4
      %vm227 = vcmask 1039360
      %v228 = vsel %vm227, %v225, %v226
      %230 = vst [vmem:[#allocation2] sm:$0xc] %v228
      %v231 = vld [vmem:[%s2] sm:$0x1]
      %v233 = vshrl.u32 %v231, 16
      %v234 = vpack.i.b16 %v233, %v233
      %v236 = vperm.slane %v234, 0
      %v237 = vunpack.c.l.bf16 %v236
      %239 = vrot.lane.b32.xlu0 %v237, 2
      %v240 = vpop.permute.xlu0 %239
      %v241 = vrot.slane %v240, 4
      %vm242 = vcmask 15360
      %v243 = vsel %vm242, %v241, %v240
      %v245 = vmul.f32 %v214, %v243
      %247 = vst [vmem:[#allocation1] ss:$2 sm:$0xff] %v245
      %v248 = vld.sshfl [vmem:[#allocation1] sm:$0xff pattern:$0x75316420]
      %v249 = vld.sshfl [vmem:[#allocation1 + $0x8] sm:$0xff pattern:$0x75316420]
      %v252 = vpack.c.bf16 %v249, %v248
      %254 = vrot.lane.b32.xlu0 %v252, 126
      %v255 = vpop.permute.xlu0 %254
      %v256 = vrot.slane %v255, 4
      %vm257 = vcmask 1031168
      %v258 = vsel %vm257, %v255, %v256
      %260 = vst [vmem:[#allocation2 + $0x4] sm:$0x3] %v258
      %v261 = vld [vmem:[%s2] sm:$0x1]
      %v263 = vpack.i.b16 %v261, %v261
      %v265 = vperm.slane %v263, 0
      %v266 = vunpack.c.l.bf16 %v265
      %268 = vrot.lane.b32.xlu0 %v266, 16
      %v269 = vpop.permute.xlu0 %268
      %v270 = vrot.slane %v269, 4
      %vm271 = vcmask 130048
      %v272 = vsel %vm271, %v270, %v269
      %v274 = vmul.f32 %v214, %v272
      %276 = vst [vmem:[#allocation1] ss:$2 sm:$0xff] %v274
      %v277 = vld.sshfl [vmem:[#allocation1] sm:$0xff pattern:$0x75316420]
      %v278 = vld.sshfl [vmem:[#allocation1 + $0x8] sm:$0xff pattern:$0x75316420]
      %v281 = vpack.c.bf16 %v278, %v277
      %v283 = vrot.slane %v281, 6
      %284 = vrot.lane.b32.xlu0 %v283, 112
      %v285 = vpop.permute.xlu0 %284
      %v286 = vrot.slane %v285, 4
      %vm287 = vcmask 916480
      %v288 = vsel %vm287, %v285, %v286
      %290 = vst [vmem:[#allocation2 + $0x4] sm:$0xc] %v288
      %291 = vst [vmem:[#allocation1] ss:$2 sm:$0xff] %v208
      %v292 = vld.sshfl [vmem:[#allocation1] sm:$0xff pattern:$0x75643120]
      %294 = vrot.lane.b32.xlu0 %v292, 111
      %v295 = vpop.permute.xlu0 %294
      %v296 = vrot.slane %v295, 4
      %vm297 = vcmask 908288
      %v298 = vsel %vm297, %v295, %v296
      %300 = vst [vmem:[#allocation2 + $0x8] sm:$0x3] %v298
      %v301 = vld [vmem:[%s2] sm:$0x1]
      %v303 = vshrl.u32 %v301, 16
      %v304 = vpack.i.b16 %v303, %v303
      %v306 = vperm.slane %v304, 0
      %v307 = vunpack.c.l.bf16 %v306
      %309 = vrot.lane.b32.xlu0 %v307, 18
      %v310 = vpop.permute.xlu0 %309
      %v311 = vrot.slane %v310, 4
      %vm312 = vcmask 146432
      %v313 = vsel %vm312, %v311, %v310
      %v315 = vmul.f32 %v214, %v313
      %317 = vst [vmem:[#allocation1] ss:$2 sm:$0xff] %v315
      %v318 = vld.sshfl [vmem:[#allocation1] sm:$0xff pattern:$0x75316420]
      %v319 = vld.sshfl [vmem:[#allocation1 + $0x8] sm:$0xff pattern:$0x75316420]
      %v322 = vpack.c.bf16 %v319, %v318
      %v324 = vrot.slane %v322, 6
      %325 = vrot.lane.b32.xlu0 %v324, 110
      %v326 = vpop.permute.xlu0 %325
      %v327 = vrot.slane %v326, 4
      %vm328 = vcmask 900096
      %v329 = vsel %vm328, %v326, %v327
      %331 = vst [vmem:[#allocation2 + $0x8] sm:$0xc] %v329
      %v332 = vld [vmem:[%s2] sm:$0x1]
      %v334 = vpack.i.b16 %v332, %v332
      %v336 = vperm.slane %v334, 0
      %v337 = vunpack.c.l.bf16 %v336
      %339 = vrot.lane.b32.xlu0 %v337, 32
      %v340 = vpop.permute.xlu0 %339
      %v341 = vrot.slane %v340, 4
      %vm342 = vcmask 261120
      %v343 = vsel %vm342, %v341, %v340
      %v345 = vmul.f32 %v214, %v343
      %347 = vst [vmem:[#allocation1] ss:$2 sm:$0xff] %v345
      %v348 = vld.sshfl [vmem:[#allocation1] sm:$0xff pattern:$0x75316420]
      %v349 = vld.sshfl [vmem:[#allocation1 + $0x8] sm:$0xff pattern:$0x75316420]
      %v352 = vpack.c.bf16 %v349, %v348
      %354 = vrot.lane.b32.xlu0 %v352, 96
      %v355 = vpop.permute.xlu0 %354
      %v356 = vrot.slane %v355, 4
      %vm357 = vcmask 785408
      %v358 = vsel %vm357, %v355, %v356
      %360 = vst [vmem:[#allocation2 + $0xc] sm:$0x3] %v358
      %s361 = scalar_lea.vmem [#allocation1], 1
      %362 = vst [vmem:[%s361] ss:$2 sm:$0xff] %v208
      %v363 = vld.sshfl [vmem:[#allocation1] sm:$0xff pattern:$0x75643120]
      %365 = vrot.lane.b32.xlu0 %v363, 95
      %v366 = vpop.permute.xlu0 %365
      %v367 = vrot.slane %v366, 4
      %vm368 = vcmask 777216
      %v369 = vsel %vm368, %v366, %v367
      %371 = vst [vmem:[#allocation2 + $0xc] sm:$0xc] %v369
      %v372 = vld [vmem:[%s2] sm:$0x1]
      %v374 = vshrl.u32 %v372, 16
      %v375 = vpack.i.b16 %v374, %v374
      %v377 = vperm.slane %v375, 0
      %v378 = vunpack.c.l.bf16 %v377
      %380 = vrot.lane.b32.xlu0 %v378, 34
      %v381 = vpop.permute.xlu0 %380
      %v382 = vrot.slane %v381, 4
      %vm383 = vcmask 277504
      %v384 = vsel %vm383, %v382, %v381
      %v386 = vmul.f32 %v214, %v384
      %388 = vst [vmem:[#allocation1] ss:$2 sm:$0xff] %v386
      %v389 = vld.sshfl [vmem:[#allocation1] sm:$0xff pattern:$0x75316420]
      %v390 = vld.sshfl [vmem:[#allocation1 + $0x8] sm:$0xff pattern:$0x75316420]
      %v393 = vpack.c.bf16 %v390, %v389
      %395 = vrot.lane.b32.xlu0 %v393, 94
      %v396 = vpop.permute.xlu0 %395
      %v397 = vrot.slane %v396, 4
      %vm398 = vcmask 769024
      %v399 = vsel %vm398, %v396, %v397
      %401 = vst [vmem:[#allocation2 + $0x10] sm:$0x3] %v399
      %v402 = vld [vmem:[%s1] sm:$0xf]
      %v403 = vld [vmem:[#allocation2] sm:$0xf]
      %v404 = vld [vmem:[#allocation2 + $0x4] sm:$0xf]
      %v405 = vld [vmem:[#allocation2 + $0x8] sm:$0xf]
      %v406 = vld [vmem:[#allocation2 + $0xc] sm:$0xf]
      %v407 = vld [vmem:[#allocation2 + $0x10] sm:$0x3]
      %v413 = vunpack.c.l.b16 %v403
      %v414 = vunpack.c.l.b16 %v404
      %v415 = vunpack.c.l.b16 %v405
      %v416 = vunpack.c.l.b16 %v406
      %v417 = vunpack.c.l.b16 %v407
      %v418 = vpack.c.b16 %v414, %v413
      %v419 = vpack.c.b16 %v416, %v415
      %v420 = vpack.c.b16 %v417, %v417
      %vm423 = vcmask 293888
      %v425 = vsel %vm423, %v402, 0
      %vm427 = vcmask 1041408
      %v429 = vsel %vm427, %v420, 0
      %431 = vmatpush.bf16.msra.mxu0 0
      %432 = vmatpush.bf16.msra.mxu0 0
      %433 = vmatpush.bf16.msra.mxu0 0
      %434 = vmatpush.bf16.msra.mxu0 0
      %435 = vmatpush.bf16.msra.mxu0 0
      %436 = vmatpush.bf16.msra.mxu0 %v429
      %437 = vmatpush.bf16.msra.mxu0 %v419
      %438 = vmatpush.bf16.msra.mxu0 %v418
      %439 = vmatmul.bf16.gmra.mxu0 %v425
      %v440 = vpop.f32.mrf.mxu0
      %v441 = vadd.f32 0.0, %v440
      %v442 = vpop.f32.mrf.mxu0
      %443 = vdwg.mxu0
      %v444 = vmul.f32 %v441, %v441
      %445 = vadd.xlane.f32.xlu0 %v441
      %v446 = vpop.xlane.xlu0 %445
      %447 = vadd.xlane.f32.xlu0 %v444
      %v448 = vpop.xlane.xlu0 %447
      %vm449 = vcmask 7168
      %450 = vst.msk [vmem:[%s206] sm:$0xff] %vm449, %v446
      %451 = vst.msk [vmem:[%s206 + $0x8] sm:$0xff] %vm449, %v448
      %p452 = scmp.lt.s32.totalorder %s18, 1
      %s453 = scalar_select %p452, %s18, 1
      %p454 = scmp.lt.s32.totalorder %s19, 1
      %s455 = scalar_select %p454, %s19, 1
      %s456 = smul.addr %s455, 2
      %s457 = smul.addr %s453, 4
      %s458 = sadd.s32 %s456, %s457
      %s459 = smul.addr %s458, 8
      %s460 = scalar_lea.vmem %s3, %s459
      // Predicated region
      $region33: #{single_conv_forward.2} parent=31 // pred_check
        %p461 = pneg %p116
      $region34: #{single_conv_forward.2} parent=31 // pred_check_branch
        %463 = sbr.rel (%p461) target = $region36
      $region35: #{single_conv_forward.2} parent=31 // pred_region
        _
      $region36: #{single_conv_forward.2} parent=31 // pred_fallthru
        _
    $region32: #{single_conv_forward.2} parent=5 // pred_fallthru
      _
    %p464 = scmp.le.s32.totalorder 2, %s9
    // Predicated region
    $region37: #{single_conv_forward.2} parent=5 // pred_check
      %p465 = pneg %p464
    $region38: #{single_conv_forward.2} parent=5 // pred_check_branch
      %467 = sbr.rel (%p465) target = $region40
    $region39: #{single_conv_forward.2} parent=5 // pred_region
      %s468 = ssub.s32 %s9, 2
      // Predicated region
      $region41: #{single_conv_forward.2} parent=39 // pred_check
        %p469 = pneg %p122
      $region42: #{single_conv_forward.2} parent=39 // pred_check_branch
        %471 = sbr.rel (%p469) target = $region44
      $region43: #{single_conv_forward.2} parent=39 // pred_region
        %p472 = scmp.lt.s32.totalorder %s20, 1
        %s473 = scalar_select %p472, %s20, 1
        %p474 = scmp.lt.s32.totalorder %s21, 1
        %s475 = scalar_select %p474, %s21, 1
        %s476 = smul.addr %s475, 2
        %s477 = smul.addr %s473, 4
        %s478 = sadd.s32 %s476, %s477
        %s479 = smul.addr %s478, 8
        %s480 = scalar_lea.vmem %s3, %s479
      $region44: #{single_conv_forward.2} parent=39 // pred_fallthru
        _
    $region40: #{single_conv_forward.2} parent=5 // pred_fallthru
      _
  $region6: #{single_conv_forward.2} parent=0 // loop_footer
    %s13 = sadd.s32 1, %s9
  $region7: #{single_conv_forward.2} parent=0 // loop_footer_branch
    %8 = sbr.rel target = $region3
  $region8: #{single_conv_forward.2} parent=0 // loop_exit
    _

// kernel: single_conv_forward.3
$region0: #{single_conv_forward.3}
  #allocation0 [shape = 'u32[]', space=smem, size = 0x4, offset = 0x4, fixed_abs, tag = 'smem constant byte address 0x4 - core index']
  #allocation1 [shape = 'u32[72,128]{1,0:T(1,128)}', space=vmem, size = 0x9000, scoped, tag = 'internal scratch']
  #allocation2 [shape = 'bf16[36,128]{1,0:T(8,128)(2,1)}', space=vmem, size = 0x2800, scoped, tag = 'scratch operand']
  %s0 = inlined_call_operand.vmem [shape: bf16[2,2,4,162], index: 0, kind: input, shape index: {}]
  %s1 = inlined_call_operand.vmem [shape: bf16[8,36], index: 1, kind: input, shape index: {}]
  %s2 = inlined_call_operand.vmem [shape: bf16[2,128], index: 2, kind: input, shape index: {}]
  %s3 = inlined_call_operand.vmem [shape: f32[4,1], index: 3, kind: input, shape index: {}]
  %s4 = inlined_call_operand.vmem [shape: f32[4,1], index: 4, kind: input, shape index: {}]
  %s5 = inlined_call_operand.vmem [shape: f32[2,4,256], index: 5, kind: output, shape index: {}]
  %s6 = sld [smem:[#allocation0]]
  $region53: #{single_conv_forward.3} parent=0
    _
  %s8 = ssub.s32 1, %s6
  %s9 = scalar_select 0, %s8, %s6
  loop: start=0, step=1, limit=6
  $region2: #{single_conv_forward.3} parent=0 // loop_pre_header
    _
  $region3: #{single_conv_forward.3} parent=0 // loop_header
    %s11 = sphi 0, %s15
    %p12 = scmp.ge.s32.totalorder %s11, 6
    %s18 = sphi 0, %s30
    %s19 = sphi 0, %s26
    %s20 = sphi 0, %s18
    %s21 = sphi 0, %s19
    %s22 = sphi 0, %s20
    %s23 = sphi 0, %s21
    %s35 = sphi 0, %s37
    %s38 = sphi 0, %s35
    %s39 = sphi 0, %s38
    %s55 = sphi 0, %s39
    %s59 = sphi 0, %s59
    %s61 = sphi 0, %s59
    %s62 = sphi 0, %s61
    %s76 = sphi 0, %s62
    %s80 = sphi 0, %s80
    %s82 = sphi 0, %s80
    %s83 = sphi 0, %s82
    %s97 = sphi 0, %s83
    %s101 = sphi 0, %s101
    %s103 = sphi 0, %s101
    %s104 = sphi 0, %s103
    %s118 = sphi 0, %s104
    %s122 = sphi 0, %s122
    %s124 = sphi 0, %s122
    %s125 = sphi 0, %s124
    %s139 = sphi 0, %s125
    %s147 = sphi 0, %s149
    %s150 = sphi 0, %s147
    %s151 = sphi 0, %s150
    %s167 = sphi 0, %s151
  $region4: #{single_conv_forward.3} parent=0 // loop_header_branch
    %14 = sbr.rel (%p12) target = $region8
  $region5: #{single_conv_forward.3} parent=0 // loop_body
    %s16 = ssub.s32 %s11, 1
    %s17 = ssub.s32 %s11, 2
    %s24 = sadd.s32 1, %s19
    %p25 = scmp.ge.s32.totalorder %s24, 2
    %s26 = scalar_select %p25, 0, %s24
    %s27 = sadd.s32 1, %s18
    %s28 = scalar_select %p25, %s27, %s18
    %p29 = scmp.ge.s32.totalorder %s28, 2
    %s30 = scalar_select %p29, 0, %s28
    %s31 = ssub.s32 %s18, %s30
    %s32 = ssub.s32 %s19, %s26
    %s33 = sor.u32 %s31, %s32
    %p34 = scmp.eq.s32.totalorder %s33, 0
    %s36 = sadd.s32 %s35, 1
    %s37 = scalar_select %p34, %s35, %s36
    %p40 = pneg %p34
    %p41 = scmp.eq.s32.totalorder %s11, 3
    %p42 = por %p40, %p41
    %p43 = scmp.ne.s32.totalorder %s35, %s38
    %p44 = scmp.eq.s32.totalorder %s11, 0
    %p45 = por %p43, %p44
    %p46 = scmp.ne.s32.totalorder %s35, %s38
    %p47 = scmp.eq.s32.totalorder %s16, 3
    %p48 = por %p46, %p47
    %p49 = scmp.ne.s32.totalorder %s38, %s39
    %p50 = scmp.eq.s32.totalorder %s16, 0
    %p51 = por %p49, %p50
    %p52 = scmp.ne.s32.totalorder %s38, %s39
    %p53 = scmp.eq.s32.totalorder %s17, 3
    %p54 = por %p52, %p53
    %p56 = scmp.ne.s32.totalorder %s39, %s55
    %p57 = scmp.eq.s32.totalorder %s17, 0
    %p58 = por %p56, %p57
    %s60 = sadd.s32 %s59, 1
    %p63 = scmp.eq.s32.totalorder %s11, 3
    %p64 = scmp.ne.s32.totalorder %s59, %s61
    %p65 = scmp.eq.s32.totalorder %s11, 0
    %p66 = por %p64, %p65
    %p67 = scmp.ne.s32.totalorder %s59, %s61
    %p68 = scmp.eq.s32.totalorder %s16, 3
    %p69 = por %p67, %p68
    %p70 = scmp.ne.s32.totalorder %s61, %s62
    %p71 = scmp.eq.s32.totalorder %s16, 0
    %p72 = por %p70, %p71
    %p73 = scmp.ne.s32.totalorder %s61, %s62
    %p74 = scmp.eq.s32.totalorder %s17, 3
    %p75 = por %p73, %p74
    %p77 = scmp.ne.s32.totalorder %s62, %s76
    %p78 = scmp.eq.s32.totalorder %s17, 0
    %p79 = por %p77, %p78
    %s81 = sadd.s32 %s80, 1
    %p84 = scmp.eq.s32.totalorder %s11, 3
    %p85 = scmp.ne.s32.totalorder %s80, %s82
    %p86 = scmp.eq.s32.totalorder %s11, 0
    %p87 = por %p85, %p86
    %p88 = scmp.ne.s32.totalorder %s80, %s82
    %p89 = scmp.eq.s32.totalorder %s16, 3
    %p90 = por %p88, %p89
    %p91 = scmp.ne.s32.totalorder %s82, %s83
    %p92 = scmp.eq.s32.totalorder %s16, 0
    %p93 = por %p91, %p92
    %p94 = scmp.ne.s32.totalorder %s82, %s83
    %p95 = scmp.eq.s32.totalorder %s17, 3
    %p96 = por %p94, %p95
    %p98 = scmp.ne.s32.totalorder %s83, %s97
    %p99 = scmp.eq.s32.totalorder %s17, 0
    %p100 = por %p98, %p99
    %s102 = sadd.s32 %s101, 1
    %p105 = scmp.eq.s32.totalorder %s11, 3
    %p106 = scmp.ne.s32.totalorder %s101, %s103
    %p107 = scmp.eq.s32.totalorder %s11, 0
    %p108 = por %p106, %p107
    %p109 = scmp.ne.s32.totalorder %s101, %s103
    %p110 = scmp.eq.s32.totalorder %s16, 3
    %p111 = por %p109, %p110
    %p112 = scmp.ne.s32.totalorder %s103, %s104
    %p113 = scmp.eq.s32.totalorder %s16, 0
    %p114 = por %p112, %p113
    %p115 = scmp.ne.s32.totalorder %s103, %s104
    %p116 = scmp.eq.s32.totalorder %s17, 3
    %p117 = por %p115, %p116
    %p119 = scmp.ne.s32.totalorder %s104, %s118
    %p120 = scmp.eq.s32.totalorder %s17, 0
    %p121 = por %p119, %p120
    %s123 = sadd.s32 %s122, 1
    %p126 = scmp.eq.s32.totalorder %s11, 3
    %p127 = scmp.ne.s32.totalorder %s122, %s124
    %p128 = scmp.eq.s32.totalorder %s11, 0
    %p129 = por %p127, %p128
    %p130 = scmp.ne.s32.totalorder %s122, %s124
    %p131 = scmp.eq.s32.totalorder %s16, 3
    %p132 = por %p130, %p131
    %p133 = scmp.ne.s32.totalorder %s124, %s125
    %p134 = scmp.eq.s32.totalorder %s16, 0
    %p135 = por %p133, %p134
    %p136 = scmp.ne.s32.totalorder %s124, %s125
    %p137 = scmp.eq.s32.totalorder %s17, 3
    %p138 = por %p136, %p137
    %p140 = scmp.ne.s32.totalorder %s125, %s139
    %p141 = scmp.eq.s32.totalorder %s17, 0
    %p142 = por %p140, %p141
    %s143 = ssub.s32 %s18, %s30
    %s144 = ssub.s32 %s19, %s26
    %s145 = sor.u32 %s143, %s144
    %p146 = scmp.eq.s32.totalorder %s145, 0
    %s148 = sadd.s32 %s147, 1
    %s149 = scalar_select %p146, %s147, %s148
    %p152 = pneg %p146
    %p153 = scmp.eq.s32.totalorder %s11, 3
    %p154 = por %p152, %p153
    %p155 = scmp.ne.s32.totalorder %s147, %s150
    %p156 = scmp.eq.s32.totalorder %s11, 0
    %p157 = por %p155, %p156
    %p158 = scmp.ne.s32.totalorder %s147, %s150
    %p159 = scmp.eq.s32.totalorder %s16, 3
    %p160 = por %p158, %p159
    %p161 = scmp.ne.s32.totalorder %s150, %s151
    %p162 = scmp.eq.s32.totalorder %s16, 0
    %p163 = por %p161, %p162
    %p164 = scmp.ne.s32.totalorder %s150, %s151
    %p165 = scmp.eq.s32.totalorder %s17, 3
    %p166 = por %p164, %p165
    %p168 = scmp.ne.s32.totalorder %s151, %s167
    %p169 = scmp.eq.s32.totalorder %s17, 0
    %p170 = por %p168, %p169
    %p171 = scmp.le.s32.totalorder 1, %s11
    %p172 = scmp.lt.s32.totalorder %s11, 5
    %p173 = pnand %p171, %p172
    %p174 = pneg %p173
    // Predicated region
    $region9: #{single_conv_forward.3} parent=5 // pred_check
      _
    $region10: #{single_conv_forward.3} parent=5 // pred_check_branch
      %176 = sbr.rel (%p173) target = $region12
    $region11: #{single_conv_forward.3} parent=5 // pred_region
      %s177 = ssub.s32 %s11, 1
      // Predicated region
      $region13: #{single_conv_forward.3} parent=11 // pred_check
        %p178 = pneg %p72
      $region14: #{single_conv_forward.3} parent=11 // pred_check_branch
        %180 = sbr.rel (%p178) target = $region16
      $region15: #{single_conv_forward.3} parent=11 // pred_region
        _
      $region16: #{single_conv_forward.3} parent=11 // pred_fallthru
        _
      // Predicated region
      $region17: #{single_conv_forward.3} parent=11 // pred_check
        %p181 = pneg %p93
      $region18: #{single_conv_forward.3} parent=11 // pred_check_branch
        %183 = sbr.rel (%p181) target = $region20
      $region19: #{single_conv_forward.3} parent=11 // pred_region
        _
      $region20: #{single_conv_forward.3} parent=11 // pred_fallthru
        _
      // Predicated region
      $region21: #{single_conv_forward.3} parent=11 // pred_check
        %p184 = pneg %p114
      $region22: #{single_conv_forward.3} parent=11 // pred_check_branch
        %186 = sbr.rel (%p184) target = $region24
      $region23: #{single_conv_forward.3} parent=11 // pred_region
        _
      $region24: #{single_conv_forward.3} parent=11 // pred_fallthru
        _
      // Predicated region
      $region25: #{single_conv_forward.3} parent=11 // pred_check
        %p187 = pneg %p135
      $region26: #{single_conv_forward.3} parent=11 // pred_check_branch
        %189 = sbr.rel (%p187) target = $region28
      $region27: #{single_conv_forward.3} parent=11 // pred_region
        _
      $region28: #{single_conv_forward.3} parent=11 // pred_fallthru
        _
    $region12: #{single_conv_forward.3} parent=5 // pred_fallthru
      _
    %p190 = scmp.lt.s32.totalorder %s11, 4
    // Predicated region
    $region29: #{single_conv_forward.3} parent=5 // pred_check
      %p191 = pneg %p190
    $region30: #{single_conv_forward.3} parent=5 // pred_check_branch
      %193 = sbr.rel (%p191) target = $region32
    $region31: #{single_conv_forward.3} parent=5 // pred_region
      // Predicated region
      $region33: #{single_conv_forward.3} parent=31 // pred_check
        %p194 = pneg %p45
      $region34: #{single_conv_forward.3} parent=31 // pred_check_branch
        %196 = sbr.rel (%p194) target = $region36
      $region35: #{single_conv_forward.3} parent=31 // pred_region
        %p197 = scmp.lt.s32.totalorder %s18, 1
        %s198 = scalar_select %p197, %s18, 1
        %p199 = scmp.lt.s32.totalorder %s19, 1
        %s200 = scalar_select %p199, %s19, 1
        %s201 = smul.addr %s200, 2
        %s202 = smul.addr %s198, 4
        %s203 = sadd.s32 %s201, %s202
        %s204 = smul.addr %s203, 2
        %s205 = scalar_lea.vmem %s0, %s204
      $region36: #{single_conv_forward.3} parent=31 // pred_fallthru
        _
    $region32: #{single_conv_forward.3} parent=5 // pred_fallthru
      _
    %p206 = scmp.le.s32.totalorder 1, %s11
    %p207 = scmp.lt.s32.totalorder %s11, 5
    %p208 = pnand %p206, %p207
    %p209 = pneg %p208
    // Predicated region
    $region37: #{single_conv_forward.3} parent=5 // pred_check
      _
    $region38: #{single_conv_forward.3} parent=5 // pred_check_branch
      %211 = sbr.rel (%p208) target = $region40
    $region39: #{single_conv_forward.3} parent=5 // pred_region
      %s212 = ssub.s32 %s11, 1
      %p213 = scmp.lt.s32.totalorder %s20, 1
      %s214 = scalar_select %p213, %s20, 1
      %p215 = scmp.lt.s32.totalorder %s21, 1
      %s216 = scalar_select %p215, %s21, 1
      %s217 = smul.addr %s216, 2
      %s218 = smul.addr %s214, 4
      %s219 = sadd.s32 %s217, %s218
      %s220 = smul.addr %s219, 2
      %s221 = scalar_lea.vmem %s0, %s220
      %p222 = pneg %p51
      %p223 = pneg %p48
      %p224 = pneg %p72
      %p225 = pneg %p69
      %p226 = pneg %p93
      %p227 = pneg %p90
      %p228 = pneg %p114
      %p229 = pneg %p111
      %p230 = pneg %p135
      %p231 = pneg %p132
      %p232 = pneg %p163
      %p233 = pneg %p160
      %p234 = scmp.lt.s32.totalorder %s20, 1
      %s235 = scalar_select %p234, %s20, 1
      %p236 = scmp.lt.s32.totalorder %s21, 1
      %s237 = scalar_select %p236, %s21, 1
      %s238 = smul.addr %s235, 2
      %s239 = sadd.s32 %s237, %s238
      %s240 = smul.addr %s239, 4
      %s241 = scalar_lea.vmem %s5, %s240
      %p242 = scmp.lt.s32.totalorder %s20, 1
      %s243 = scalar_select %p242, %s20, 1
      %p244 = scmp.lt.s32.totalorder %s21, 1
      %s245 = scalar_select %p244, %s21, 1
      %s246 = smul.addr %s245, 2
      %s247 = smul.addr %s243, 4
      %s248 = sadd.s32 %s246, %s247
      %s249 = smul.addr %s248, 2
      %s250 = scalar_lea.vmem %s0, %s249
      %p251 = scmp.lt.s32.totalorder %s20, 1
      %s252 = scalar_select %p251, %s20, 1
      %p253 = scmp.lt.s32.totalorder %s21, 1
      %s254 = scalar_select %p253, %s21, 1
      %s255 = smul.addr %s252, 2
      %s256 = sadd.s32 %s254, %s255
      %s257 = smul.addr %s256, 4
      %s258 = scalar_lea.vmem %s5, %s257
      %v260 = vld [vmem:[%s250] sm:$0xf]
      %v261 = vld [vmem:[%s2] sm:$0x1]
      %v263 = vpack.i.b16 %v261, %v261
      %v265 = vperm.slane %v263, 0
      %v266 = vunpack.c.l.bf16 %v260
      %v267 = vunpack.c.l.bf16 %v265
      %v268 = vmul.f32 %v266, %v267
      %v269 = vpack.c.bf16 %v268, %v268
      %270 = vst [vmem:[#allocation2] sm:$0x3] %v269
      %s272 = scalar_lea.vmem [#allocation1], 1
      %273 = vst [vmem:[%s272] ss:$2 sm:$0xff] %v260
      %v274 = vld.sshfl [vmem:[#allocation1] sm:$0xff pattern:$0x75643120]
      %276 = vrot.lane.b32.xlu0 %v274, 127
      %v277 = vpop.permute.xlu0 %276
      %v278 = vrot.slane %v277, 4
      %vm279 = vcmask 1039360
      %v280 = vsel %vm279, %v277, %v278
      %282 = vst [vmem:[#allocation2] sm:$0xc] %v280
      %v283 = vld [vmem:[%s2] sm:$0x1]
      %v285 = vshrl.u32 %v283, 16
      %v286 = vpack.i.b16 %v285, %v285
      %v288 = vperm.slane %v286, 0
      %v289 = vunpack.c.l.bf16 %v288
      %291 = vrot.lane.b32.xlu0 %v289, 2
      %v292 = vpop.permute.xlu0 %291
      %v293 = vrot.slane %v292, 4
      %vm294 = vcmask 15360
      %v295 = vsel %vm294, %v293, %v292
      %v297 = vmul.f32 %v266, %v295
      %299 = vst [vmem:[#allocation1] ss:$2 sm:$0xff] %v297
      %v300 = vld.sshfl [vmem:[#allocation1] sm:$0xff pattern:$0x75316420]
      %v301 = vld.sshfl [vmem:[#allocation1 + $0x8] sm:$0xff pattern:$0x75316420]
      %v304 = vpack.c.bf16 %v301, %v300
      %306 = vrot.lane.b32.xlu0 %v304, 126
      %v307 = vpop.permute.xlu0 %306
      %v308 = vrot.slane %v307, 4
      %vm309 = vcmask 1031168
      %v310 = vsel %vm309, %v307, %v308
      %312 = vst [vmem:[#allocation2 + $0x4] sm:$0x3] %v310
      %v313 = vld [vmem:[%s2] sm:$0x1]
      %v315 = vpack.i.b16 %v313, %v313
      %v317 = vperm.slane %v315, 0
      %v318 = vunpack.c.l.bf16 %v317
      %320 = vrot.lane.b32.xlu0 %v318, 16
      %v321 = vpop.permute.xlu0 %320
      %v322 = vrot.slane %v321, 4
      %vm323 = vcmask 130048
      %v324 = vsel %vm323, %v322, %v321
      %v326 = vmul.f32 %v266, %v324
      %328 = vst [vmem:[#allocation1] ss:$2 sm:$0xff] %v326
      %v329 = vld.sshfl [vmem:[#allocation1] sm:$0xff pattern:$0x75316420]
      %v330 = vld.sshfl [vmem:[#allocation1 + $0x8] sm:$0xff pattern:$0x75316420]
      %v333 = vpack.c.bf16 %v330, %v329
      %v335 = vrot.slane %v333, 6
      %336 = vrot.lane.b32.xlu0 %v335, 112
      %v337 = vpop.permute.xlu0 %336
      %v338 = vrot.slane %v337, 4
      %vm339 = vcmask 916480
      %v340 = vsel %vm339, %v337, %v338
      %342 = vst [vmem:[#allocation2 + $0x4] sm:$0xc] %v340
      %343 = vst [vmem:[#allocation1] ss:$2 sm:$0xff] %v260
      %v344 = vld.sshfl [vmem:[#allocation1] sm:$0xff pattern:$0x75643120]
      %346 = vrot.lane.b32.xlu0 %v344, 111
      %v347 = vpop.permute.xlu0 %346
      %v348 = vrot.slane %v347, 4
      %vm349 = vcmask 908288
      %v350 = vsel %vm349, %v347, %v348
      %352 = vst [vmem:[#allocation2 + $0x8] sm:$0x3] %v350
      %v353 = vld [vmem:[%s2] sm:$0x1]
      %v355 = vshrl.u32 %v353, 16
      %v356 = vpack.i.b16 %v355, %v355
      %v358 = vperm.slane %v356, 0
      %v359 = vunpack.c.l.bf16 %v358
      %361 = vrot.lane.b32.xlu0 %v359, 18
      %v362 = vpop.permute.xlu0 %361
      %v363 = vrot.slane %v362, 4
      %vm364 = vcmask 146432
      %v365 = vsel %vm364, %v363, %v362
      %v367 = vmul.f32 %v266, %v365
      %369 = vst [vmem:[#allocation1] ss:$2 sm:$0xff] %v367
      %v370 = vld.sshfl [vmem:[#allocation1] sm:$0xff pattern:$0x75316420]
      %v371 = vld.sshfl [vmem:[#allocation1 + $0x8] sm:$0xff pattern:$0x75316420]
      %v374 = vpack.c.bf16 %v371, %v370
      %v376 = vrot.slane %v374, 6
      %377 = vrot.lane.b32.xlu0 %v376, 110
      %v378 = vpop.permute.xlu0 %377
      %v379 = vrot.slane %v378, 4
      %vm380 = vcmask 900096
      %v381 = vsel %vm380, %v378, %v379
      %383 = vst [vmem:[#allocation2 + $0x8] sm:$0xc] %v381
      %v384 = vld [vmem:[%s2] sm:$0x1]
      %v386 = vpack.i.b16 %v384, %v384
      %v388 = vperm.slane %v386, 0
      %v389 = vunpack.c.l.bf16 %v388
      %391 = vrot.lane.b32.xlu0 %v389, 32
      %v392 = vpop.permute.xlu0 %391
      %v393 = vrot.slane %v392, 4
      %vm394 = vcmask 261120
      %v395 = vsel %vm394, %v393, %v392
      %v397 = vmul.f32 %v266, %v395
      %399 = vst [vmem:[#allocation1] ss:$2 sm:$0xff] %v397
      %v400 = vld.sshfl [vmem:[#allocation1] sm:$0xff pattern:$0x75316420]
      %v401 = vld.sshfl [vmem:[#allocation1 + $0x8] sm:$0xff pattern:$0x75316420]
      %v404 = vpack.c.bf16 %v401, %v400
      %406 = vrot.lane.b32.xlu0 %v404, 96
      %v407 = vpop.permute.xlu0 %406
      %v408 = vrot.slane %v407, 4
      %vm409 = vcmask 785408
      %v410 = vsel %vm409, %v407, %v408
      %412 = vst [vmem:[#allocation2 + $0xc] sm:$0x3] %v410
      %s413 = scalar_lea.vmem [#allocation1], 1
      %414 = vst [vmem:[%s413] ss:$2 sm:$0xff] %v260
      %v415 = vld.sshfl [vmem:[#allocation1] sm:$0xff pattern:$0x75643120]
      %417 = vrot.lane.b32.xlu0 %v415, 95
      %v418 = vpop.permute.xlu0 %417
      %v419 = vrot.slane %v418, 4
      %vm420 = vcmask 777216
      %v421 = vsel %vm420, %v418, %v419
      %423 = vst [vmem:[#allocation2 + $0xc] sm:$0xc] %v421
      %v424 = vld [vmem:[%s2] sm:$0x1]
      %v426 = vshrl.u32 %v424, 16
      %v427 = vpack.i.b16 %v426, %v426
      %v429 = vperm.slane %v427, 0
      %v430 = vunpack.c.l.bf16 %v429
      %432 = vrot.lane.b32.xlu0 %v430, 34
      %v433 = vpop.permute.xlu0 %432
      %v434 = vrot.slane %v433, 4
      %vm435 = vcmask 277504
      %v436 = vsel %vm435, %v434, %v433
      %v438 = vmul.f32 %v266, %v436
      %440 = vst [vmem:[#allocation1] ss:$2 sm:$0xff] %v438
      %v441 = vld.sshfl [vmem:[#allocation1] sm:$0xff pattern:$0x75316420]
      %v442 = vld.sshfl [vmem:[#allocation1 + $0x8] sm:$0xff pattern:$0x75316420]
      %v445 = vpack.c.bf16 %v442, %v441
      %447 = vrot.lane.b32.xlu0 %v445, 94
      %v448 = vpop.permute.xlu0 %447
      %v449 = vrot.slane %v448, 4
      %vm450 = vcmask 769024
      %v451 = vsel %vm450, %v448, %v449
      %453 = vst [vmem:[#allocation2 + $0x10] sm:$0x3] %v451
      %v454 = vld [vmem:[%s1] sm:$0xf]
      %v455 = vld [vmem:[#allocation2] sm:$0xf]
      %v456 = vld [vmem:[#allocation2 + $0x4] sm:$0xf]
      %v457 = vld [vmem:[#allocation2 + $0x8] sm:$0xf]
      %v458 = vld [vmem:[#allocation2 + $0xc] sm:$0xf]
      %v459 = vld [vmem:[#allocation2 + $0x10] sm:$0x3]
      %v465 = vunpack.c.l.b16 %v455
      %v466 = vunpack.c.l.b16 %v456
      %v467 = vunpack.c.l.b16 %v457
      %v468 = vunpack.c.l.b16 %v458
      %v469 = vunpack.c.l.b16 %v459
      %v470 = vpack.c.b16 %v466, %v465
      %v471 = vpack.c.b16 %v468, %v467
      %v472 = vpack.c.b16 %v469, %v469
      %vm475 = vcmask 293888
      %v477 = vsel %vm475, %v454, 0
      %vm479 = vcmask 1041408
      %v481 = vsel %vm479, %v472, 0
      %483 = vmatpush.bf16.msra.mxu0 0
      %484 = vmatpush.bf16.msra.mxu0 0
      %485 = vmatpush.bf16.msra.mxu0 0
      %486 = vmatpush.bf16.msra.mxu0 0
      %487 = vmatpush.bf16.msra.mxu0 0
      %488 = vmatpush.bf16.msra.mxu0 %v481
      %489 = vmatpush.bf16.msra.mxu0 %v471
      %490 = vmatpush.bf16.msra.mxu0 %v470
      %491 = vmatmul.bf16.gmra.mxu0 %v477
      %v492 = vpop.f32.mrf.mxu0
      %v493 = vadd.f32 0.0, %v492
      %v494 = vpop.f32.mrf.mxu0
      %495 = vdwg.mxu0
      %v496 = vld [vmem:[%s3] sm:$0xf]
      %498 = vset.pattern.permute.xlu0 0
      %499 = vperm.xlu0 %498, %v496
      %v500 = vpop.permute.xlu0 %499
      %v502 = vmul.f32 %v493, %v500
      %v503 = vld [vmem:[%s4] sm:$0xf]
      %505 = vset.pattern.permute.xlu0 0
      %506 = vperm.xlu0 %505, %v503
      %v507 = vpop.permute.xlu0 %506
      %v509 = vadd.f32 %v502, %v507
      %v510 = vmax.f32 %v509, 0.0
      %511 = vst [vmem:[%s258] sm:$0xf] %v510
      %p512 = scmp.lt.s32.totalorder %s20, 1
      %s513 = scalar_select %p512, %s20, 1
      %p514 = scmp.lt.s32.totalorder %s21, 1
      %s515 = scalar_select %p514, %s21, 1
      %s516 = smul.addr %s513, 2
      %s517 = sadd.s32 %s515, %s516
      %s518 = smul.addr %s517, 4
      %s519 = scalar_lea.vmem %s5, %s518
      // Predicated region
      $region41: #{single_conv_forward.3} parent=39 // pred_check
        %p520 = pneg %p160
      $region42: #{single_conv_forward.3} parent=39 // pred_check_branch
        %522 = sbr.rel (%p520) target = $region44
      $region43: #{single_conv_forward.3} parent=39 // pred_region
        _
      $region44: #{single_conv_forward.3} parent=39 // pred_fallthru
        _
    $region40: #{single_conv_forward.3} parent=5 // pred_fallthru
      _
    %p523 = scmp.le.s32.totalorder 2, %s11
    // Predicated region
    $region45: #{single_conv_forward.3} parent=5 // pred_check
      %p524 = pneg %p523
    $region46: #{single_conv_forward.3} parent=5 // pred_check_branch
      %526 = sbr.rel (%p524) target = $region48
    $region47: #{single_conv_forward.3} parent=5 // pred_region
      %s527 = ssub.s32 %s11, 2
      // Predicated region
      $region49: #{single_conv_forward.3} parent=47 // pred_check
        %p528 = pneg %p166
      $region50: #{single_conv_forward.3} parent=47 // pred_check_branch
        %530 = sbr.rel (%p528) target = $region52
      $region51: #{single_conv_forward.3} parent=47 // pred_region
        %p531 = scmp.lt.s32.totalorder %s22, 1
        %s532 = scalar_select %p531, %s22, 1
        %p533 = scmp.lt.s32.totalorder %s23, 1
        %s534 = scalar_select %p533, %s23, 1
        %s535 = smul.addr %s532, 2
        %s536 = sadd.s32 %s534, %s535
        %s537 = smul.addr %s536, 4
        %s538 = scalar_lea.vmem %s5, %s537
      $region52: #{single_conv_forward.3} parent=47 // pred_fallthru
        _
    $region48: #{single_conv_forward.3} parent=5 // pred_fallthru
      _
  $region6: #{single_conv_forward.3} parent=0 // loop_footer
    %s15 = sadd.s32 1, %s11
  $region7: #{single_conv_forward.3} parent=0 // loop_footer_branch
    %10 = sbr.rel target = $region3
  $region8: #{single_conv_forward.3} parent=0 // loop_exit
    _

</llo_original>
